<compile_context>
chip_gen: v7x
topology: tpu7x:2x2x1
jax: 0.10.0
libtpu: 0.0.40
codegen_flags: <defaults>
</compile_context>

<pallas_src>
import functools

import jax
import jax.numpy as jnp
from jax import lax
from jax.experimental import pallas as pl
from jax.experimental.pallas import tpu as pltpu

GAMMA = 1.5
ALPHA = 0.25
LANES = 128


def _focal_loss_kernel(pred_ref, true_ref, out_ref, acc_ref, *,
                       inv_total, total, gamma, alpha,
                       row_tile, acc_rows, blocks_per_core, total_blocks,
                       has_phantom_blocks, needs_elem_mask):
    c = pl.program_id(0)               # TensorCore-parallel axis
    i = pl.program_id(1)               # sequential reduction axis (per core)
    global_blk = c * blocks_per_core + i

    @pl.when(i == 0)
    def _init():
        acc_ref[...] = jnp.zeros_like(acc_ref)

    x = pred_ref[...].astype(jnp.float32)
    t = true_ref[...].astype(jnp.float32)

    # Shared transcendental: e = exp(-|x|) feeds both the stable BCE and the sigmoid.
    e = jnp.exp(-jnp.abs(x))
    # Numerically stable BCE-with-logits (reduction='none'):
    #   max(x,0) - x*t + log(1 + exp(-|x|))
    bce = jnp.maximum(x, 0.0) - x * t + jnp.log1p(e)

    # sigmoid(x) = num / (1+e), num = 1 (x>=0) else e.  Approx reciprocal (EUP vrcp) plus
    # one Newton step on the VPU instead of an f32 divide.
    d = 1.0 + e
    inv = pl.reciprocal(d, approx=True)
    inv = inv * (2.0 - d * inv)                      # rel err ~1e-7
    p = jnp.where(x >= 0.0, 1.0, e) * inv

    # 1 - p_t = 1 - (t*p + (1-t)*(1-p)) = p + t*(1 - 2p)
    one_m_pt = p + t * (1.0 - 2.0 * p)
    # alpha_factor = t*a + (1-t)*(1-a) = (1-a) + t*(2a - 1)   (constants folded at trace time)
    alpha_factor = (1.0 - alpha) + t * (2.0 * alpha - 1.0)

    if gamma == 1.5:
        mod = one_m_pt * jnp.sqrt(one_m_pt)
    elif gamma == 2.0:
        mod = one_m_pt * one_m_pt
    elif gamma == 1.0:
        mod = one_m_pt
    else:
        mod = jnp.power(one_m_pt, gamma)

    loss = bce * alpha_factor * mod                  # (row_tile, 128) f32

    def accumulate(val):
        # Fold the (row_tile,128) tile onto the (acc_rows,128) VMEM slab with VPU adds;
        # the expensive cross-lane/sublane reduce happens once, outside the kernel.
        if acc_rows > 0:
            acc_ref[...] += val.reshape(row_tile // acc_rows, acc_rows, LANES).sum(axis=0)
        else:
            # Cold path (only reachable when the whole array fits in a single ragged block).
            acc_ref[0:1, :] = acc_ref[0:1, :] + val.sum(axis=0, keepdims=True)

    if needs_elem_mask:
        def masked(val):
            base = global_blk * (row_tile * LANES)
            rid = lax.broadcasted_iota(jnp.int32, (row_tile, LANES), 0)
            cid = lax.broadcasted_iota(jnp.int32, (row_tile, LANES), 1)
            flat = base + rid * LANES + cid
            return jnp.where(flat < total, val, 0.0)

        @pl.when(global_blk < total_blocks - 1)
        def _main():
            accumulate(loss)

        @pl.when(global_blk == total_blocks - 1)   # ragged tail: mask by flat element index
        def _tail():
            accumulate(masked(loss))
    elif has_phantom_blocks:
        @pl.when(global_blk < total_blocks)        # skip re-fetched phantom blocks
        def _main():
            accumulate(loss)
    else:
        accumulate(loss)

    @pl.when(i == pl.num_programs(1) - 1)
    def _fini():
        out_ref[0] = acc_ref[...] * inv_total      # per-core partial, mean already folded in


def focal_loss(pred, true, *, gamma=GAMMA, alpha=ALPHA, max_row_tile=2048, num_cores=2):
    """FocalLoss forward. pred/true: identical shapes (e.g. NCHW), native dtype. Returns scalar mean."""
    assert pred.shape == true.shape
    total = pred.size
    assert total > 0

    # Native dtype, row-major flatten: free relayout, no HBM copy.
    pred_flat = pred.reshape(-1)
    true_flat = true.reshape(-1)

    rem = total % LANES
    if rem:
        # TODO(synk): a fully copy-free path for lane-ragged sizes needs a separate 1-D tail
        # kernel; the in-kernel flat-index mask makes the pad *values* irrelevant.
        pad = LANES - rem
        pred_flat = jnp.concatenate([pred_flat, jnp.zeros((pad,), pred_flat.dtype)])
        true_flat = jnp.concatenate([true_flat, jnp.zeros((pad,), true_flat.dtype)])

    rows = pred_flat.shape[0] // LANES
    pred2d = pred_flat.reshape(rows, LANES)          # free
    true2d = true_flat.reshape(rows, LANES)

    if rows <= max_row_tile:
        row_tile = rows                              # single block == full dim (always legal)
    else:
        row_tile = max_row_tile                      # multiple of 32 -> (8/16,128) tile rule ok
    total_blocks = pl.cdiv(rows, row_tile)

    num_cores = max(1, min(num_cores, total_blocks))
    blocks_per_core = pl.cdiv(total_blocks, num_cores)
    has_phantom_blocks = num_cores * blocks_per_core != total_blocks
    needs_elem_mask = total_blocks * row_tile * LANES != total

    acc_rows = 0
    for cand in (32, 16, 8):                         # widest slab that divides the tile
        if row_tile % cand == 0:
            acc_rows = cand
            break
    scratch_rows = acc_rows if acc_rows else 8

    kernel = functools.partial(
        _focal_loss_kernel,
        inv_total=1.0 / float(total), total=total, gamma=gamma, alpha=alpha,
        row_tile=row_tile, acc_rows=acc_rows,
        blocks_per_core=blocks_per_core, total_blocks=total_blocks,
        has_phantom_blocks=has_phantom_blocks, needs_elem_mask=needs_elem_mask)

    def in_map(c, i):
        # Clamp so phantom blocks (uneven split across cores) re-fetch valid memory;
        # the kernel skips accumulating them.
        return (jnp.minimum(c * blocks_per_core + i, total_blocks - 1), 0)

    out = pl.pallas_call(
        kernel,
        out_shape=jax.ShapeDtypeStruct((num_cores, scratch_rows, LANES), jnp.float32),
        grid_spec=pltpu.PrefetchScalarGridSpec(
            num_scalar_prefetch=0,
            grid=(num_cores, blocks_per_core),
            in_specs=[
                pl.BlockSpec((row_tile, LANES), in_map),
                pl.BlockSpec((row_tile, LANES), in_map),
            ],
            out_specs=pl.BlockSpec((1, scratch_rows, LANES), lambda c, i: (c, 0, 0)),
            scratch_shapes=[pltpu.VMEM((scratch_rows, LANES), jnp.float32)],
        ),
        compiler_params=pltpu.CompilerParams(
            dimension_semantics=("parallel", "arbitrary"),
        ),
    )(pred2d, true2d)

    # Tiny (cores, scratch_rows, 128) partial-sum slab; single cross-lane reduce here.
    return jnp.sum(out)


def _reference(pred, true, gamma=GAMMA, alpha=ALPHA):
    x = pred.astype(jnp.float32)
    t = true.astype(jnp.float32)
    bce = jnp.maximum(x, 0.0) - x * t + jnp.log1p(jnp.exp(-jnp.abs(x)))
    p = jax.nn.sigmoid(x)
    p_t = t * p + (1.0 - t) * (1.0 - p)
    af = t * alpha + (1.0 - t) * (1.0 - alpha)
    mf = jnp.power(1.0 - p_t, gamma)
    return jnp.mean(bce * af * mf)


if __name__ == "__main__":
    key = jax.random.PRNGKey(0)
    k1, k2 = jax.random.split(key)
    # NCHW, small shapes: batch=2, channels=4, spatial=16x16
    pred = jax.random.normal(k1, (2, 4, 16, 16), dtype=jnp.float32) * 2.0
    true = (jax.random.uniform(k2, (2, 4, 16, 16)) > 0.7).astype(jnp.float32)

    out = focal_loss(pred, true)
    out = jax.block_until_ready(out)

    ref = _reference(pred, true)
    assert jnp.allclose(out, ref, rtol=1e-5, atol=1e-6), (out, ref)
    print("KERNEL_OK")
</pallas_src>

<mosaic_0001>
module attributes {stable_mosaic.version = 11 : i64} {
  func.func @_focal_loss_kernel(%arg0: i32, %arg1: i32, %arg2: memref<16x128xf32, #tpu.memory_space<vmem>>, %arg3: memref<16x128xf32, #tpu.memory_space<vmem>>, %arg4: memref<1x16x128xf32, #tpu.memory_space<vmem>>, %arg5: memref<16x128xf32, #tpu.memory_space<vmem>>) attributes {dimension_semantics = [#tpu.dimension_semantics<parallel>, #tpu.dimension_semantics<arbitrary>], iteration_bounds = array<i64: 1, 1>, scalar_prefetch = 0 : i64, scratch_operands = 1 : i64, tpu.core_type = #tpu.core_type<tc>, window_params = [{transform_indices = @transform_0, window_bounds = array<i64: 16, 128>}, {transform_indices = @transform_1, window_bounds = array<i64: 16, 128>}, {transform_indices = @transform_2, window_bounds = array<i64: 1, 16, 128>}]} {
    %c0_i32 = arith.constant 0 : i32
    %0 = arith.cmpi eq, %arg1, %c0_i32 : i32
    %1 = arith.extui %0 : i1 to i32
    %c0_i32_0 = arith.constant 0 : i32
    %2 = arith.cmpi ne, %1, %c0_i32_0 : i32
    scf.if %2 {
      %cst_20 = arith.constant 0.000000e+00 : f32
      %49 = vector.broadcast %cst_20 : f32 to vector<16x128xf32>
      %c0_21 = arith.constant 0 : index
      %c0_22 = arith.constant 0 : index
      %50 = vector.load %arg5[%c0_21, %c0_22] : memref<16x128xf32, #tpu.memory_space<vmem>>, vector<16x128xf32>
      tpu.vector_store %arg5[%c0_21, %c0_22], %49 {strides = array<i32>} : memref<16x128xf32, #tpu.memory_space<vmem>>, vector<16x128xf32>,
    } else {
    }
    %c0 = arith.constant 0 : index
    %c0_1 = arith.constant 0 : index
    %3 = vector.load %arg2[%c0, %c0_1] : memref<16x128xf32, #tpu.memory_space<vmem>>, vector<16x128xf32>
    %c0_2 = arith.constant 0 : index
    %c0_3 = arith.constant 0 : index
    %4 = vector.load %arg3[%c0_2, %c0_3] : memref<16x128xf32, #tpu.memory_space<vmem>>, vector<16x128xf32>
    %5 = math.absf %3 : vector<16x128xf32>
    %cst = arith.constant 0.000000e+00 : f32
    %6 = vector.broadcast %cst : f32 to vector<16x128xf32>
    %7 = arith.subf %6, %5 : vector<16x128xf32>
    %8 = math.exp %7 : vector<16x128xf32>
    %cst_4 = arith.constant 0.000000e+00 : f32
    %9 = vector.broadcast %cst_4 : f32 to vector<16x128xf32>
    %10 = arith.maximumf %3, %9 : vector<16x128xf32>
    %11 = arith.mulf %3, %4 : vector<16x128xf32>
    %12 = arith.subf %10, %11 : vector<16x128xf32>
    %13 = math.log1p %8 : vector<16x128xf32>
    %14 = arith.addf %12, %13 : vector<16x128xf32>
    %cst_5 = arith.constant 1.000000e+00 : f32
    %15 = vector.broadcast %cst_5 : f32 to vector<16x128xf32>
    %16 = arith.addf %15, %8 : vector<16x128xf32>
    %17 = tpu.reciprocal %16 {approx = true} : vector<16x128xf32> -> vector<16x128xf32>
    %18 = arith.mulf %16, %17 : vector<16x128xf32>
    %cst_6 = arith.constant 2.000000e+00 : f32
    %19 = vector.broadcast %cst_6 : f32 to vector<16x128xf32>
    %20 = arith.subf %19, %18 : vector<16x128xf32>
    %21 = arith.mulf %17, %20 : vector<16x128xf32>
    %cst_7 = arith.constant 0.000000e+00 : f32
    %22 = vector.broadcast %cst_7 : f32 to vector<16x128xf32>
    %23 = arith.cmpf oge, %3, %22 : vector<16x128xf32>
    %cst_8 = arith.constant 1.000000e+00 : f32
    %24 = vector.broadcast %cst_8 : f32 to vector<16x128xf32>
    %25 = arith.select %23, %24, %8 : vector<16x128xi1>, vector<16x128xf32>
    %26 = arith.mulf %25, %21 : vector<16x128xf32>
    %cst_9 = arith.constant 2.000000e+00 : f32
    %27 = vector.broadcast %cst_9 : f32 to vector<16x128xf32>
    %28 = arith.mulf %27, %26 : vector<16x128xf32>
    %cst_10 = arith.constant 1.000000e+00 : f32
    %29 = vector.broadcast %cst_10 : f32 to vector<16x128xf32>
    %30 = arith.subf %29, %28 : vector<16x128xf32>
    %31 = arith.mulf %4, %30 : vector<16x128xf32>
    %32 = arith.addf %26, %31 : vector<16x128xf32>
    %cst_11 = arith.constant -5.000000e-01 : f32
    %33 = vector.broadcast %cst_11 : f32 to vector<16x128xf32>
    %34 = arith.mulf %4, %33 : vector<16x128xf32>
    %cst_12 = arith.constant 7.500000e-01 : f32
    %35 = vector.broadcast %cst_12 : f32 to vector<16x128xf32>
    %36 = arith.addf %35, %34 : vector<16x128xf32>
    %37 = math.sqrt %32 : vector<16x128xf32>
    %38 = arith.mulf %32, %37 : vector<16x128xf32>
    %39 = arith.mulf %14, %36 : vector<16x128xf32>
    %40 = arith.mulf %39, %38 : vector<16x128xf32>
    %c0_13 = arith.constant 0 : index
    %c0_14 = arith.constant 0 : index
    %41 = vector.load %arg5[%c0_13, %c0_14] : memref<16x128xf32, #tpu.memory_space<vmem>>, vector<16x128xf32>
    %42 = vector.shape_cast %40 : vector<16x128xf32> to vector<1x16x128xf32>
    %cst_15 = arith.constant dense<0.000000e+00> : vector<16x128xf32>
    %43 = vector.multi_reduction <add>, %42, %cst_15 [0] : vector<1x16x128xf32> to vector<16x128xf32>
    %44 = arith.addf %41, %43 : vector<16x128xf32>
    %c0_16 = arith.constant 0 : index
    %c0_17 = arith.constant 0 : index
    %45 = vector.load %arg5[%c0_16, %c0_17] : memref<16x128xf32, #tpu.memory_space<vmem>>, vector<16x128xf32>
    tpu.vector_store %arg5[%c0_16, %c0_17], %44 {strides = array<i32>} : memref<16x128xf32, #tpu.memory_space<vmem>>, vector<16x128xf32>,
    %c0_i32_18 = arith.constant 0 : i32
    %46 = arith.cmpi eq, %arg1, %c0_i32_18 : i32
    %47 = arith.extui %46 : i1 to i32
    %c0_i32_19 = arith.constant 0 : i32
    %48 = arith.cmpi ne, %47, %c0_i32_19 : i32
    scf.if %48 {
      %c0_20 = arith.constant 0 : index
      %c0_21 = arith.constant 0 : index
      %49 = vector.load %arg5[%c0_20, %c0_21] : memref<16x128xf32, #tpu.memory_space<vmem>>, vector<16x128xf32>
      %cst_22 = arith.constant 4.8828125E-4 : f32
      %50 = vector.broadcast %cst_22 : f32 to vector<16x128xf32>
      %51 = arith.mulf %49, %50 : vector<16x128xf32>
      %c0_23 = arith.constant 0 : index
      %c0_24 = arith.constant 0 : index
      %c0_25 = arith.constant 0 : index
      %52 = vector.load %arg4[%c0_23, %c0_24, %c0_25] : memref<1x16x128xf32, #tpu.memory_space<vmem>>, vector<1x16x128xf32>
      %53 = vector.shape_cast %52 : vector<1x16x128xf32> to vector<16x128xf32>
      %54 = vector.shape_cast %51 : vector<16x128xf32> to vector<1x16x128xf32>
      tpu.vector_store %arg4[%c0_23, %c0_24, %c0_25], %54 {strides = array<i32>} : memref<1x16x128xf32, #tpu.memory_space<vmem>>, vector<1x16x128xf32>,
    } else {
    }
    return
  }
  func.func @transform_0(%arg0: i32, %arg1: i32) -> (i32, i32) {
    %c1_i32 = arith.constant 1 : i32
    %0 = arith.muli %arg0, %c1_i32 : i32
    %1 = arith.addi %0, %arg1 : i32
    %c0_i32 = arith.constant 0 : i32
    %2 = arith.minsi %1, %c0_i32 : i32
    %c0_i32_0 = arith.constant 0 : i32
    %c0_i32_1 = arith.constant 0 : i32
    return %2, %c0_i32_0 : i32, i32
  }
  func.func @transform_1(%arg0: i32, %arg1: i32) -> (i32, i32) {
    %c1_i32 = arith.constant 1 : i32
    %0 = arith.muli %arg0, %c1_i32 : i32
    %1 = arith.addi %0, %arg1 : i32
    %c0_i32 = arith.constant 0 : i32
    %2 = arith.minsi %1, %c0_i32 : i32
    %c0_i32_0 = arith.constant 0 : i32
    %c0_i32_1 = arith.constant 0 : i32
    return %2, %c0_i32_0 : i32, i32
  }
  func.func @transform_2(%arg0: i32, %arg1: i32) -> (i32, i32, i32) {
    %c0_i32 = arith.constant 0 : i32
    %c0_i32_0 = arith.constant 0 : i32
    %c0_i32_1 = arith.constant 0 : i32
    return %arg0, %c0_i32, %c0_i32_0 : i32, i32, i32
  }
}

</mosaic_0001>

<llo_original>
// kernel: tpu_custom_call.1
$region0: #{tpu_custom_call.1}
  #allocation0 [shape = 'u32[]', space=smem, size = 0x4, offset = 0x4, fixed_abs, tag = 'smem constant byte address 0x4 - core index']
  #allocation1 [shape = 'u32[144,128]{1,0:T(1,128)}', space=vmem, size = 0x12000, scoped, tag = 'internal scratch']
  #allocation2 [shape = 'f32[16,128]{1,0:T(8,128)}', space=vmem, size = 0x2000, scoped, tag = 'scratch operand']
  %s0 = inlined_call_operand.hbm [shape: f32[16,128], index: 0, kind: input, shape index: {}]
  %s1 = inlined_call_operand.hbm [shape: f32[16,128], index: 1, kind: input, shape index: {}]
  %s2 = inlined_call_operand.hbm [shape: f32[1,16,128], index: 2, kind: output, shape index: {}]
  %s3 = sld [smem:[#allocation0]]
  $region34: #{tpu_custom_call.1} parent=0
    _
  %s5 = ssub.s32 1, %s3
  %s6 = scalar_select 0, %s5, %s3
  $region1: #{tpu_custom_call.1} parent=0
    #allocation3 [shape = 'u8[8192]{0}', space=vmem, size = 0x2000, scoped, tag = 'input window, operand 0, single buffered']
    #allocation4 [shape = 's32[1]{0}', space=sflag, size = 0x4, scoped, tag = 'scoped memory for tpu_custom_call.1']
    #allocation5 [shape = 's32[1]{0}', space=sflag, size = 0x4, scoped, tag = 'scoped memory for tpu_custom_call.1']
    #allocation6 [shape = 'u8[8192]{0}', space=vmem, size = 0x2000, scoped, tag = 'input window, operand 1, single buffered']
    #allocation7 [shape = 's32[1]{0}', space=sflag, size = 0x4, scoped, tag = 'scoped memory for tpu_custom_call.1']
    #allocation8 [shape = 'u8[8192]{0}', space=vmem, size = 0x2000, scoped, tag = 'output window, operand 0, single buffered']
    %7 = vsyncpa [#allocation4], 0
    %8 = vsyncpa [#allocation7], 0
    %9 = vsyncpa [#allocation5], 0
    // Predicated region
    $region2: #{tpu_custom_call.1} parent=1 // pred_check
      _
    $region3: #{tpu_custom_call.1} parent=1 // pred_check_branch
      %11 = sbr.rel (0) target = $region5
    $region4: #{tpu_custom_call.1} parent=1 // pred_region
      %s12 = sadd.s32 0, 0
      %p13 = scmp.lt.s32.totalorder %s12, 0
      %s14 = scalar_select %p13, %s12, 0
      %s15 = smul.u32 2, %s14
      %s17 = ssub.s32 256, 256
      %18 = vsyncadd [#allocation4], %s17
      %s19 = smul.addr %s15, 128
      %s20 = scalar_lea.hbm %s0, %s19
      %s21 = sshll.u32 [#allocation3], 4
      %s22 = int_to_ptr.vmem [resolvable:$true] %s21
      %27 = dma.hbm_to_vmem [thread:$0]  %s20, 256, %s22, [#allocation4], 128, 128, 8
    $region5: #{tpu_custom_call.1} parent=1 // pred_fallthru
      _
    // Predicated region
    $region6: #{tpu_custom_call.1} parent=1 // pred_check
      _
    $region7: #{tpu_custom_call.1} parent=1 // pred_check_branch
      %29 = sbr.rel (0) target = $region9
    $region8: #{tpu_custom_call.1} parent=1 // pred_region
      %s30 = sadd.s32 0, 0
      %p31 = scmp.lt.s32.totalorder %s30, 0
      %s32 = scalar_select %p31, %s30, 0
      %s33 = smul.u32 2, %s32
      %s35 = ssub.s32 256, 256
      %36 = vsyncadd [#allocation7], %s35
      %s37 = smul.addr %s33, 128
      %s38 = scalar_lea.hbm %s1, %s37
      %s39 = sshll.u32 [#allocation6], 4
      %s40 = int_to_ptr.vmem [resolvable:$true] %s39
      %45 = dma.hbm_to_vmem [thread:$0]  %s38, 256, %s40, [#allocation7], 128, 128, 8
    $region9: #{tpu_custom_call.1} parent=1 // pred_fallthru
      _
    // Predicated region
    $region10: #{tpu_custom_call.1} parent=1 // pred_check
      _
    $region11: #{tpu_custom_call.1} parent=1 // pred_check_branch
      %47 = sbr.rel (0) target = $region13
    $region12: #{tpu_custom_call.1} parent=1 // pred_region
      %48 = dma.done [#allocation4], 256
    $region13: #{tpu_custom_call.1} parent=1 // pred_fallthru
      _
    // Predicated region
    $region14: #{tpu_custom_call.1} parent=1 // pred_check
      _
    $region15: #{tpu_custom_call.1} parent=1 // pred_check_branch
      %50 = sbr.rel (0) target = $region17
    $region16: #{tpu_custom_call.1} parent=1 // pred_region
      %51 = dma.done [#allocation7], 256
    $region17: #{tpu_custom_call.1} parent=1 // pred_fallthru
      _
    %s52 = sadd.s32 0, 0
    %p53 = scmp.lt.s32.totalorder %s52, 0
    %s54 = scalar_select %p53, %s52, 0
    %s55 = smul.u32 2, %s54
    %s56 = sadd.s32 0, 0
    %p57 = scmp.lt.s32.totalorder %s56, 0
    %s58 = scalar_select %p57, %s56, 0
    %s59 = smul.u32 2, %s58
    %p60 = scmp.eq.s32.totalorder 0, 0
    // Predicated region
    $region18: #{tpu_custom_call.1} parent=1 // pred_check
      %p61 = pneg %p60
    $region19: #{tpu_custom_call.1} parent=1 // pred_check_branch
      %63 = sbr.rel (%p61) target = $region21
    $region20: #{tpu_custom_call.1} parent=1 // pred_region
      %64 = vst [vmem:[#allocation2] sm:$0xff] 0.0
      %65 = vst [vmem:[#allocation2 + $0x8] sm:$0xff] 0.0
    $region21: #{tpu_custom_call.1} parent=1 // pred_fallthru
      _
    %v66 = vld [vmem:[#allocation3] sm:$0xff]
    %v67 = vld [vmem:[#allocation3 + $0x8] sm:$0xff]
    %v68 = vld [vmem:[#allocation6] sm:$0xff]
    %v69 = vld [vmem:[#allocation6 + $0x8] sm:$0xff]
    %v70 = vand.u32 2147483647, %v66
    %v71 = vand.u32 2147483647, %v67
    %v72 = vsub.f32 0.0, %v70
    %v73 = vsub.f32 0.0, %v71
    %v74 = vmul.f32 %v72, 1.442695
    %v75 = vpow.pop %v74
    %v76 = vmul.f32 %v73, 1.442695
    %v77 = vpow.pop %v76
    %v78 = vmax.f32 %v66, 0.0
    %v79 = vmax.f32 %v67, 0.0
    %v80 = vmul.f32 %v66, %v68
    %v81 = vmul.f32 %v67, %v69
    %v82 = vsub.f32 %v78, %v80
    %v83 = vsub.f32 %v79, %v81
    %v84 = vadd.f32 %v75, 1.0
    %v85 = vlog2.pop %v84
    %v86 = vmul.f32 %v85, 0.6931472
    %v87 = vmul.f32 -0.5, %v75
    %v88 = vadd.f32 %v87, 1.0
    %v89 = vmul.f32 %v88, %v75
    %v90 = vand.u32 2147483647, %v75
    %vm91 = vcmp.lt.f32.partialorder %v90, 0.0004427343
    %v92 = vsel %vm91, %v89, %v86
    %v93 = vadd.f32 %v77, 1.0
    %v94 = vlog2.pop %v93
    %v95 = vmul.f32 %v94, 0.6931472
    %v96 = vmul.f32 -0.5, %v77
    %v97 = vadd.f32 %v96, 1.0
    %v98 = vmul.f32 %v97, %v77
    %v99 = vand.u32 2147483647, %v77
    %vm100 = vcmp.lt.f32.partialorder %v99, 0.0004427343
    %v101 = vsel %vm100, %v98, %v95
    %v102 = vadd.f32 %v82, %v92
    %v103 = vadd.f32 %v83, %v101
    %v104 = vadd.f32 %v75, 1.0
    %v105 = vadd.f32 %v77, 1.0
    %v106 = vrcp.pop %v104
    %v107 = vrcp.pop %v105
    %v108 = vmul.f32 %v104, %v106
    %v109 = vmul.f32 %v105, %v107
    %v110 = vsub.f32 2.0, %v108
    %v111 = vsub.f32 2.0, %v109
    %v112 = vmul.f32 %v106, %v110
    %v113 = vmul.f32 %v107, %v111
    %vm114 = vcmp.ge.f32.partialorder %v66, 0.0
    %vm115 = vcmp.ge.f32.partialorder %v67, 0.0
    %v116 = vsel %vm114, 1.0, %v75
    %v117 = vsel %vm115, 1.0, %v77
    %v118 = vmul.f32 %v116, %v112
    %v119 = vmul.f32 %v117, %v113
    %v120 = vmul.f32 %v118, 2.0
    %v121 = vmul.f32 %v119, 2.0
    %v122 = vsub.f32 1.0, %v120
    %v123 = vsub.f32 1.0, %v121
    %v124 = vmul.f32 %v68, %v122
    %v125 = vmul.f32 %v69, %v123
    %v126 = vadd.f32 %v118, %v124
    %v127 = vadd.f32 %v119, %v125
    %v128 = vmul.f32 %v68, -0.5
    %v129 = vmul.f32 %v69, -0.5
    %v130 = vadd.f32 %v128, 0.75
    %v131 = vadd.f32 %v129, 0.75
    %v132 = vrsqrt.pop %v126
    %v133 = vmul.f32 %v126, %v132
    %vm134 = vcmp.eq.f32.partialorder %v126, inf
    %v135 = vsel %vm134, %v126, %v133
    %vm136 = vcmp.eq.f32.partialorder %v126, 0.0
    %v137 = vand.u32 %v126, 2147483648
    %v138 = vsel %vm136, %v137, %v135
    %v139 = vrsqrt.pop %v127
    %v140 = vmul.f32 %v127, %v139
    %vm141 = vcmp.eq.f32.partialorder %v127, inf
    %v142 = vsel %vm141, %v127, %v140
    %vm143 = vcmp.eq.f32.partialorder %v127, 0.0
    %v144 = vand.u32 %v127, 2147483648
    %v145 = vsel %vm143, %v144, %v142
    %v146 = vmul.f32 %v126, %v138
    %v147 = vmul.f32 %v127, %v145
    %v148 = vmul.f32 %v102, %v130
    %v149 = vmul.f32 %v103, %v131
    %v150 = vmul.f32 %v148, %v146
    %v151 = vmul.f32 %v149, %v147
    %v152 = vld [vmem:[#allocation2] sm:$0xff]
    %v153 = vld [vmem:[#allocation2 + $0x8] sm:$0xff]
    %v154 = vadd.f32 %v150, 0.0
    %v155 = vadd.f32 %v151, 0.0
    %v156 = vadd.f32 %v152, %v154
    %v157 = vadd.f32 %v153, %v155
    %158 = vst [vmem:[#allocation2] sm:$0xff] %v156
    %159 = vst [vmem:[#allocation2 + $0x8] sm:$0xff] %v157
    // Predicated region
    $region22: #{tpu_custom_call.1} parent=1 // pred_check
      %p160 = pneg %p60
    $region23: #{tpu_custom_call.1} parent=1 // pred_check_branch
      %162 = sbr.rel (%p160) target = $region25
    $region24: #{tpu_custom_call.1} parent=1 // pred_region
      %v163 = vld [vmem:[#allocation2] sm:$0xff]
      %v164 = vld [vmem:[#allocation2 + $0x8] sm:$0xff]
      %v165 = vmul.f32 %v163, 0.00048828125
      %v166 = vmul.f32 %v164, 0.00048828125
      %167 = vst [vmem:[#allocation8] sm:$0xff] %v165
      %168 = vst [vmem:[#allocation8 + $0x8] sm:$0xff] %v166
    $region25: #{tpu_custom_call.1} parent=1 // pred_fallthru
      _
    // Predicated region
    $region26: #{tpu_custom_call.1} parent=1 // pred_check
      _
    $region27: #{tpu_custom_call.1} parent=1 // pred_check_branch
      %170 = sbr.rel (0) target = $region29
    $region28: #{tpu_custom_call.1} parent=1 // pred_region
      %s172 = ssub.s32 256, 256
      %173 = vsyncadd [#allocation5], %s172
      %s174 = sshll.u32 [#allocation8], 4
      %s175 = int_to_ptr.vmem [resolvable:$true] %s174
      %180 = dma.vmem_to_hbm [thread:$0]  %s175, 256, %s2, [#allocation5], 128, 128, 8
    $region29: #{tpu_custom_call.1} parent=1 // pred_fallthru
      _
    // Predicated region
    $region30: #{tpu_custom_call.1} parent=1 // pred_check
      _
    $region31: #{tpu_custom_call.1} parent=1 // pred_check_branch
      %182 = sbr.rel (0) target = $region33
    $region32: #{tpu_custom_call.1} parent=1 // pred_region
      %183 = dma.done [#allocation5], 256
    $region33: #{tpu_custom_call.1} parent=1 // pred_fallthru
      _
    %184 = vsyncpa [#allocation4], 1
    %185 = vsyncpa [#allocation7], 1
    %186 = vsyncpa [#allocation5], 1

</llo_original>
